<compile_context>
chip_gen: v7x
topology: tpu7x:2x2x1
jax: 0.10.0
libtpu: 0.0.40
codegen_flags: <defaults>
</compile_context>

<pallas_src>
import jax
import jax.numpy as jnp
from jax.experimental import pallas as pl
from jax.experimental.pallas import tpu as pltpu

N_INPUTS = 3
N_HIDDEN = 4
N_OUTPUT_CLASSES = 2

LANES = 128            # vreg lane width; batch elements per lane row
CHUNK = 16             # sublanes per inner chunk -> (CHUNK,128) slabs, ~40 live vregs
DEFAULT_BLOCK_B = 65536  # batch elements (lanes) per grid step; double-buffered VMEM ~2.6 MiB


def _cdiv(a: int, b: int) -> int:
    return (a + b - 1) // b


def _round_up(n: int, m: int) -> int:
    return _cdiv(n, m) * m


def _mlp_softmax_kernel(x_ref, w1_ref, b1_ref, w2_ref, b2_ref, w3_ref, b3_ref, o_ref):
    # x_ref: (N_INPUTS, SB, 128) f32 VMEM tile; o_ref: (N_OUTPUT_CLASSES, SB, 128) f32.
    # Hoist every SMEM scalar read out of the chunk loop (issued once per grid step).
    w1 = [[w1_ref[k, j] for j in range(N_HIDDEN)] for k in range(N_INPUTS)]
    b1 = [b1_ref[j] for j in range(N_HIDDEN)]
    w2 = [[w2_ref[k, j] for j in range(2 * N_HIDDEN)] for k in range(N_HIDDEN)]
    b2 = [b2_ref[j] for j in range(2 * N_HIDDEN)]
    w3 = [[w3_ref[k, j] for j in range(N_OUTPUT_CLASSES)] for k in range(2 * N_HIDDEN)]
    b3 = [b3_ref[j] for j in range(N_OUTPUT_CLASSES)]

    n_chunks = x_ref.shape[1] // CHUNK

    @pl.loop(0, n_chunks)
    def _(c):
        off = pl.multiple_of(c * CHUNK, CHUNK)
        # Dense (CHUNK, 128) slabs: batch fills every sublane and lane of each vreg.
        x = [x_ref[k, pl.ds(off, CHUNK), :] for k in range(N_INPUTS)]

        # Layer 1: Linear(3 -> 4) + ReLU (unrolled scalar*vector VPU FMAs).
        h1 = []
        for j in range(N_HIDDEN):
            acc = x[0] * w1[0][j]
            for k in range(1, N_INPUTS):
                acc = acc + x[k] * w1[k][j]
            h1.append(jnp.maximum(acc + b1[j], 0.0))

        # Layer 2: Linear(4 -> 8) + ReLU.
        h2 = []
        for j in range(2 * N_HIDDEN):
            acc = h1[0] * w2[0][j]
            for k in range(1, N_HIDDEN):
                acc = acc + h1[k] * w2[k][j]
            h2.append(jnp.maximum(acc + b2[j], 0.0))

        # Layer 3: Linear(8 -> 2) logits.
        logits = []
        for j in range(N_OUTPUT_CLASSES):
            acc = h2[0] * w3[0][j]
            for k in range(1, 2 * N_HIDDEN):
                acc = acc + h2[k] * w3[k][j]
            logits.append(acc + b3[j])

        # Dropout (p = 0.3) in eval mode == identity.

        # 2-class softmax via the sigmoid identity: one exp, one EUP reciprocal,
        # and p0 + p1 == 1 exactly. Direct per-class row stores (no concatenate).
        d = logits[0] - logits[1]
        p1 = pl.reciprocal(1.0 + jnp.exp(d), approx=True)
        p0 = 1.0 - p1
        o_ref[0, pl.ds(off, CHUNK), :] = p0
        o_ref[1, pl.ds(off, CHUNK), :] = p1


def my_custom_module_forward(x, params, *, block_b: int = DEFAULT_BLOCK_B):
    """x: (B, N_INPUTS) float32; params: dict of weights/biases. Returns (B, 2) probs."""
    w1, b1, w2, b2, w3, b3 = (
        params["w1"], params["b1"], params["w2"],
        params["b2"], params["w3"], params["b3"],
    )
    B = x.shape[0]

    # Sublanes needed to hold B batch elements (128 per sublane row), rounded to CHUNK.
    s_needed = _round_up(max(1, _cdiv(B, LANES)), CHUNK)
    # Sublanes per grid step from block_b.
    sb = _round_up(max(CHUNK, block_b // LANES), CHUNK)
    # Keep >= 2 grid steps when possible so v7x megacore can use both TensorCores.
    if s_needed >= 2 * CHUNK:
        sb = min(sb, _round_up(_cdiv(s_needed, 2), CHUNK))
    sb = min(sb, s_needed)
    s_total = _round_up(s_needed, sb)
    b_pad = s_total * LANES
    grid = (s_total // sb,)

    # Lane+sublane dense layout: (features, sublane, lane); batch index = sublane*128 + lane.
    xt = jnp.pad(x.astype(jnp.float32).T, ((0, 0), (0, b_pad - B)))
    xt = xt.reshape(N_INPUTS, s_total, LANES)
    # TODO(synk): for large B the transpose+pad pass and the final slice+transpose are extra
    #             XLA HBM round trips; accept feature-major (3,B) / emit (2,B) to avoid them.

    # Weights/biases are tiny -> keep them in SMEM and read them as scalars.
    smem = pl.BlockSpec(memory_space=pltpu.MemorySpace.SMEM)

    out = pl.pallas_call(
        _mlp_softmax_kernel,
        out_shape=jax.ShapeDtypeStruct((N_OUTPUT_CLASSES, s_total, LANES), jnp.float32),
        grid_spec=pltpu.PrefetchScalarGridSpec(
            num_scalar_prefetch=0,
            grid=grid,
            in_specs=[
                pl.BlockSpec((N_INPUTS, sb, LANES), lambda i: (0, i, 0)),  # x tile, pipelined
                smem, smem, smem, smem, smem, smem,                        # w1,b1,w2,b2,w3,b3
            ],
            out_specs=pl.BlockSpec((N_OUTPUT_CLASSES, sb, LANES), lambda i: (0, i, 0)),
        ),
        compiler_params=pltpu.CompilerParams(
            dimension_semantics=("parallel",),  # megacore sharding on v7x; no-op on v5e/v6e
        ),
    )(xt, w1, b1, w2, b2, w3, b3)

    return out.reshape(N_OUTPUT_CLASSES, b_pad)[:, :B].T


def reference_forward(x, params):
    """Pure-JAX reference (eval-mode dropout) for correctness checking."""
    h1 = jnp.maximum(x @ params["w1"] + params["b1"], 0.0)
    h2 = jnp.maximum(h1 @ params["w2"] + params["b2"], 0.0)
    logits = h2 @ params["w3"] + params["b3"]
    return jax.nn.softmax(logits, axis=-1)


def init_params(key):
    """Deterministic init matching the PyTorch module's layer shapes.

    Weights stored transposed relative to PyTorch (in_features, out_features);
    biases stored 1-D (out_features,) so they live cleanly in SMEM.
    """
    k1, k2, k3, k4, k5, k6 = jax.random.split(key, 6)

    def uniform_init(k, shape, fan_in):
        bound = 1.0 / jnp.sqrt(float(fan_in))
        return jax.random.uniform(k, shape, jnp.float32, -bound, bound)

    return {
        "w1": uniform_init(k1, (N_INPUTS, N_HIDDEN), N_INPUTS),
        "b1": uniform_init(k2, (N_HIDDEN,), N_INPUTS),
        "w2": uniform_init(k3, (N_HIDDEN, 2 * N_HIDDEN), N_HIDDEN),
        "b2": uniform_init(k4, (2 * N_HIDDEN,), N_HIDDEN),
        "w3": uniform_init(k5, (2 * N_HIDDEN, N_OUTPUT_CLASSES), 2 * N_HIDDEN),
        "b3": uniform_init(k6, (N_OUTPUT_CLASSES,), 2 * N_HIDDEN),
    }


if __name__ == "__main__":
    key = jax.random.PRNGKey(0)
    pkey, xkey1, xkey2 = jax.random.split(key, 3)
    params = init_params(pkey)

    # Small primary test (grid = 1 step, 1 chunk).
    B1 = 8
    x1 = jax.random.normal(xkey1, (B1, N_INPUTS), jnp.float32)
    out1 = jax.block_until_ready(my_custom_module_forward(x1, params))
    assert out1.shape == (B1, N_OUTPUT_CLASSES)
    assert bool(jnp.allclose(jnp.sum(out1, axis=-1), 1.0, atol=1e-5))
    assert bool(jnp.allclose(out1, reference_forward(x1, params), atol=2e-3, rtol=2e-3))

    # Secondary test exercising a multi-step grid (>=2 steps, padded batch tail).
    B2 = 2051
    x2 = jax.random.normal(xkey2, (B2, N_INPUTS), jnp.float32)
    out2 = jax.block_until_ready(my_custom_module_forward(x2, params))
    assert out2.shape == (B2, N_OUTPUT_CLASSES)
    assert bool(jnp.allclose(jnp.sum(out2, axis=-1), 1.0, atol=1e-5))
    assert bool(jnp.allclose(out2, reference_forward(x2, params), atol=2e-3, rtol=2e-3))

    print("KERNEL_OK")
</pallas_src>

<mosaic_0001>
module attributes {stable_mosaic.version = 11 : i64} {
  func.func @_mlp_softmax_kernel(%arg0: i32, %arg1: memref<3x16x128xf32, #tpu.memory_space<vmem>>, %arg2: memref<3x4xf32, #tpu.memory_space<smem>>, %arg3: memref<4xf32, #tpu.memory_space<smem>>, %arg4: memref<4x8xf32, #tpu.memory_space<smem>>, %arg5: memref<8xf32, #tpu.memory_space<smem>>, %arg6: memref<8x2xf32, #tpu.memory_space<smem>>, %arg7: memref<2xf32, #tpu.memory_space<smem>>, %arg8: memref<2x16x128xf32, #tpu.memory_space<vmem>>) attributes {dimension_semantics = [#tpu.dimension_semantics<parallel>], iteration_bounds = array<i64: 1>, scalar_prefetch = 0 : i64, scratch_operands = 0 : i64, tpu.core_type = #tpu.core_type<tc>, window_params = [{transform_indices = @transform_0, window_bounds = array<i64: 3, 16, 128>}, {transform_indices = @transform_1, window_bounds = array<i64: 3, 4>}, {transform_indices = @transform_2, window_bounds = array<i64: 4>}, {transform_indices = @transform_3, window_bounds = array<i64: 4, 8>}, {transform_indices = @transform_4, window_bounds = array<i64: 8>}, {transform_indices = @transform_5, window_bounds = array<i64: 8, 2>}, {transform_indices = @transform_6, window_bounds = array<i64: 2>}, {transform_indices = @transform_7, window_bounds = array<i64: 2, 16, 128>}]} {
    %c0 = arith.constant 0 : index
    %c0_0 = arith.constant 0 : index
    %0 = memref.load %arg2[%c0, %c0_0] : memref<3x4xf32, #tpu.memory_space<smem>>
    %c0_1 = arith.constant 0 : index
    %c1 = arith.constant 1 : index
    %1 = memref.load %arg2[%c0_1, %c1] : memref<3x4xf32, #tpu.memory_space<smem>>
    %c0_2 = arith.constant 0 : index
    %c2 = arith.constant 2 : index
    %2 = memref.load %arg2[%c0_2, %c2] : memref<3x4xf32, #tpu.memory_space<smem>>
    %c0_3 = arith.constant 0 : index
    %c3 = arith.constant 3 : index
    %3 = memref.load %arg2[%c0_3, %c3] : memref<3x4xf32, #tpu.memory_space<smem>>
    %c1_4 = arith.constant 1 : index
    %c0_5 = arith.constant 0 : index
    %4 = memref.load %arg2[%c1_4, %c0_5] : memref<3x4xf32, #tpu.memory_space<smem>>
    %c1_6 = arith.constant 1 : index
    %c1_7 = arith.constant 1 : index
    %5 = memref.load %arg2[%c1_6, %c1_7] : memref<3x4xf32, #tpu.memory_space<smem>>
    %c1_8 = arith.constant 1 : index
    %c2_9 = arith.constant 2 : index
    %6 = memref.load %arg2[%c1_8, %c2_9] : memref<3x4xf32, #tpu.memory_space<smem>>
    %c1_10 = arith.constant 1 : index
    %c3_11 = arith.constant 3 : index
    %7 = memref.load %arg2[%c1_10, %c3_11] : memref<3x4xf32, #tpu.memory_space<smem>>
    %c2_12 = arith.constant 2 : index
    %c0_13 = arith.constant 0 : index
    %8 = memref.load %arg2[%c2_12, %c0_13] : memref<3x4xf32, #tpu.memory_space<smem>>
    %c2_14 = arith.constant 2 : index
    %c1_15 = arith.constant 1 : index
    %9 = memref.load %arg2[%c2_14, %c1_15] : memref<3x4xf32, #tpu.memory_space<smem>>
    %c2_16 = arith.constant 2 : index
    %c2_17 = arith.constant 2 : index
    %10 = memref.load %arg2[%c2_16, %c2_17] : memref<3x4xf32, #tpu.memory_space<smem>>
    %c2_18 = arith.constant 2 : index
    %c3_19 = arith.constant 3 : index
    %11 = memref.load %arg2[%c2_18, %c3_19] : memref<3x4xf32, #tpu.memory_space<smem>>
    %c0_20 = arith.constant 0 : index
    %12 = memref.load %arg3[%c0_20] : memref<4xf32, #tpu.memory_space<smem>>
    %c1_21 = arith.constant 1 : index
    %13 = memref.load %arg3[%c1_21] : memref<4xf32, #tpu.memory_space<smem>>
    %c2_22 = arith.constant 2 : index
    %14 = memref.load %arg3[%c2_22] : memref<4xf32, #tpu.memory_space<smem>>
    %c3_23 = arith.constant 3 : index
    %15 = memref.load %arg3[%c3_23] : memref<4xf32, #tpu.memory_space<smem>>
    %c0_24 = arith.constant 0 : index
    %c0_25 = arith.constant 0 : index
    %16 = memref.load %arg4[%c0_24, %c0_25] : memref<4x8xf32, #tpu.memory_space<smem>>
    %c0_26 = arith.constant 0 : index
    %c1_27 = arith.constant 1 : index
    %17 = memref.load %arg4[%c0_26, %c1_27] : memref<4x8xf32, #tpu.memory_space<smem>>
    %c0_28 = arith.constant 0 : index
    %c2_29 = arith.constant 2 : index
    %18 = memref.load %arg4[%c0_28, %c2_29] : memref<4x8xf32, #tpu.memory_space<smem>>
    %c0_30 = arith.constant 0 : index
    %c3_31 = arith.constant 3 : index
    %19 = memref.load %arg4[%c0_30, %c3_31] : memref<4x8xf32, #tpu.memory_space<smem>>
    %c0_32 = arith.constant 0 : index
    %c4 = arith.constant 4 : index
    %20 = memref.load %arg4[%c0_32, %c4] : memref<4x8xf32, #tpu.memory_space<smem>>
    %c0_33 = arith.constant 0 : index
    %c5 = arith.constant 5 : index
    %21 = memref.load %arg4[%c0_33, %c5] : memref<4x8xf32, #tpu.memory_space<smem>>
    %c0_34 = arith.constant 0 : index
    %c6 = arith.constant 6 : index
    %22 = memref.load %arg4[%c0_34, %c6] : memref<4x8xf32, #tpu.memory_space<smem>>
    %c0_35 = arith.constant 0 : index
    %c7 = arith.constant 7 : index
    %23 = memref.load %arg4[%c0_35, %c7] : memref<4x8xf32, #tpu.memory_space<smem>>
    %c1_36 = arith.constant 1 : index
    %c0_37 = arith.constant 0 : index
    %24 = memref.load %arg4[%c1_36, %c0_37] : memref<4x8xf32, #tpu.memory_space<smem>>
    %c1_38 = arith.constant 1 : index
    %c1_39 = arith.constant 1 : index
    %25 = memref.load %arg4[%c1_38, %c1_39] : memref<4x8xf32, #tpu.memory_space<smem>>
    %c1_40 = arith.constant 1 : index
    %c2_41 = arith.constant 2 : index
    %26 = memref.load %arg4[%c1_40, %c2_41] : memref<4x8xf32, #tpu.memory_space<smem>>
    %c1_42 = arith.constant 1 : index
    %c3_43 = arith.constant 3 : index
    %27 = memref.load %arg4[%c1_42, %c3_43] : memref<4x8xf32, #tpu.memory_space<smem>>
    %c1_44 = arith.constant 1 : index
    %c4_45 = arith.constant 4 : index
    %28 = memref.load %arg4[%c1_44, %c4_45] : memref<4x8xf32, #tpu.memory_space<smem>>
    %c1_46 = arith.constant 1 : index
    %c5_47 = arith.constant 5 : index
    %29 = memref.load %arg4[%c1_46, %c5_47] : memref<4x8xf32, #tpu.memory_space<smem>>
    %c1_48 = arith.constant 1 : index
    %c6_49 = arith.constant 6 : index
    %30 = memref.load %arg4[%c1_48, %c6_49] : memref<4x8xf32, #tpu.memory_space<smem>>
    %c1_50 = arith.constant 1 : index
    %c7_51 = arith.constant 7 : index
    %31 = memref.load %arg4[%c1_50, %c7_51] : memref<4x8xf32, #tpu.memory_space<smem>>
    %c2_52 = arith.constant 2 : index
    %c0_53 = arith.constant 0 : index
    %32 = memref.load %arg4[%c2_52, %c0_53] : memref<4x8xf32, #tpu.memory_space<smem>>
    %c2_54 = arith.constant 2 : index
    %c1_55 = arith.constant 1 : index
    %33 = memref.load %arg4[%c2_54, %c1_55] : memref<4x8xf32, #tpu.memory_space<smem>>
    %c2_56 = arith.constant 2 : index
    %c2_57 = arith.constant 2 : index
    %34 = memref.load %arg4[%c2_56, %c2_57] : memref<4x8xf32, #tpu.memory_space<smem>>
    %c2_58 = arith.constant 2 : index
    %c3_59 = arith.constant 3 : index
    %35 = memref.load %arg4[%c2_58, %c3_59] : memref<4x8xf32, #tpu.memory_space<smem>>
    %c2_60 = arith.constant 2 : index
    %c4_61 = arith.constant 4 : index
    %36 = memref.load %arg4[%c2_60, %c4_61] : memref<4x8xf32, #tpu.memory_space<smem>>
    %c2_62 = arith.constant 2 : index
    %c5_63 = arith.constant 5 : index
    %37 = memref.load %arg4[%c2_62, %c5_63] : memref<4x8xf32, #tpu.memory_space<smem>>
    %c2_64 = arith.constant 2 : index
    %c6_65 = arith.constant 6 : index
    %38 = memref.load %arg4[%c2_64, %c6_65] : memref<4x8xf32, #tpu.memory_space<smem>>
    %c2_66 = arith.constant 2 : index
    %c7_67 = arith.constant 7 : index
    %39 = memref.load %arg4[%c2_66, %c7_67] : memref<4x8xf32, #tpu.memory_space<smem>>
    %c3_68 = arith.constant 3 : index
    %c0_69 = arith.constant 0 : index
    %40 = memref.load %arg4[%c3_68, %c0_69] : memref<4x8xf32, #tpu.memory_space<smem>>
    %c3_70 = arith.constant 3 : index
    %c1_71 = arith.constant 1 : index
    %41 = memref.load %arg4[%c3_70, %c1_71] : memref<4x8xf32, #tpu.memory_space<smem>>
    %c3_72 = arith.constant 3 : index
    %c2_73 = arith.constant 2 : index
    %42 = memref.load %arg4[%c3_72, %c2_73] : memref<4x8xf32, #tpu.memory_space<smem>>
    %c3_74 = arith.constant 3 : index
    %c3_75 = arith.constant 3 : index
    %43 = memref.load %arg4[%c3_74, %c3_75] : memref<4x8xf32, #tpu.memory_space<smem>>
    %c3_76 = arith.constant 3 : index
    %c4_77 = arith.constant 4 : index
    %44 = memref.load %arg4[%c3_76, %c4_77] : memref<4x8xf32, #tpu.memory_space<smem>>
    %c3_78 = arith.constant 3 : index
    %c5_79 = arith.constant 5 : index
    %45 = memref.load %arg4[%c3_78, %c5_79] : memref<4x8xf32, #tpu.memory_space<smem>>
    %c3_80 = arith.constant 3 : index
    %c6_81 = arith.constant 6 : index
    %46 = memref.load %arg4[%c3_80, %c6_81] : memref<4x8xf32, #tpu.memory_space<smem>>
    %c3_82 = arith.constant 3 : index
    %c7_83 = arith.constant 7 : index
    %47 = memref.load %arg4[%c3_82, %c7_83] : memref<4x8xf32, #tpu.memory_space<smem>>
    %c0_84 = arith.constant 0 : index
    %48 = memref.load %arg5[%c0_84] : memref<8xf32, #tpu.memory_space<smem>>
    %c1_85 = arith.constant 1 : index
    %49 = memref.load %arg5[%c1_85] : memref<8xf32, #tpu.memory_space<smem>>
    %c2_86 = arith.constant 2 : index
    %50 = memref.load %arg5[%c2_86] : memref<8xf32, #tpu.memory_space<smem>>
    %c3_87 = arith.constant 3 : index
    %51 = memref.load %arg5[%c3_87] : memref<8xf32, #tpu.memory_space<smem>>
    %c4_88 = arith.constant 4 : index
    %52 = memref.load %arg5[%c4_88] : memref<8xf32, #tpu.memory_space<smem>>
    %c5_89 = arith.constant 5 : index
    %53 = memref.load %arg5[%c5_89] : memref<8xf32, #tpu.memory_space<smem>>
    %c6_90 = arith.constant 6 : index
    %54 = memref.load %arg5[%c6_90] : memref<8xf32, #tpu.memory_space<smem>>
    %c7_91 = arith.constant 7 : index
    %55 = memref.load %arg5[%c7_91] : memref<8xf32, #tpu.memory_space<smem>>
    %c0_92 = arith.constant 0 : index
    %c0_93 = arith.constant 0 : index
    %56 = memref.load %arg6[%c0_92, %c0_93] : memref<8x2xf32, #tpu.memory_space<smem>>
    %c0_94 = arith.constant 0 : index
    %c1_95 = arith.constant 1 : index
    %57 = memref.load %arg6[%c0_94, %c1_95] : memref<8x2xf32, #tpu.memory_space<smem>>
    %c1_96 = arith.constant 1 : index
    %c0_97 = arith.constant 0 : index
    %58 = memref.load %arg6[%c1_96, %c0_97] : memref<8x2xf32, #tpu.memory_space<smem>>
    %c1_98 = arith.constant 1 : index
    %c1_99 = arith.constant 1 : index
    %59 = memref.load %arg6[%c1_98, %c1_99] : memref<8x2xf32, #tpu.memory_space<smem>>
    %c2_100 = arith.constant 2 : index
    %c0_101 = arith.constant 0 : index
    %60 = memref.load %arg6[%c2_100, %c0_101] : memref<8x2xf32, #tpu.memory_space<smem>>
    %c2_102 = arith.constant 2 : index
    %c1_103 = arith.constant 1 : index
    %61 = memref.load %arg6[%c2_102, %c1_103] : memref<8x2xf32, #tpu.memory_space<smem>>
    %c3_104 = arith.constant 3 : index
    %c0_105 = arith.constant 0 : index
    %62 = memref.load %arg6[%c3_104, %c0_105] : memref<8x2xf32, #tpu.memory_space<smem>>
    %c3_106 = arith.constant 3 : index
    %c1_107 = arith.constant 1 : index
    %63 = memref.load %arg6[%c3_106, %c1_107] : memref<8x2xf32, #tpu.memory_space<smem>>
    %c4_108 = arith.constant 4 : index
    %c0_109 = arith.constant 0 : index
    %64 = memref.load %arg6[%c4_108, %c0_109] : memref<8x2xf32, #tpu.memory_space<smem>>
    %c4_110 = arith.constant 4 : index
    %c1_111 = arith.constant 1 : index
    %65 = memref.load %arg6[%c4_110, %c1_111] : memref<8x2xf32, #tpu.memory_space<smem>>
    %c5_112 = arith.constant 5 : index
    %c0_113 = arith.constant 0 : index
    %66 = memref.load %arg6[%c5_112, %c0_113] : memref<8x2xf32, #tpu.memory_space<smem>>
    %c5_114 = arith.constant 5 : index
    %c1_115 = arith.constant 1 : index
    %67 = memref.load %arg6[%c5_114, %c1_115] : memref<8x2xf32, #tpu.memory_space<smem>>
    %c6_116 = arith.constant 6 : index
    %c0_117 = arith.constant 0 : index
    %68 = memref.load %arg6[%c6_116, %c0_117] : memref<8x2xf32, #tpu.memory_space<smem>>
    %c6_118 = arith.constant 6 : index
    %c1_119 = arith.constant 1 : index
    %69 = memref.load %arg6[%c6_118, %c1_119] : memref<8x2xf32, #tpu.memory_space<smem>>
    %c7_120 = arith.constant 7 : index
    %c0_121 = arith.constant 0 : index
    %70 = memref.load %arg6[%c7_120, %c0_121] : memref<8x2xf32, #tpu.memory_space<smem>>
    %c7_122 = arith.constant 7 : index
    %c1_123 = arith.constant 1 : index
    %71 = memref.load %arg6[%c7_122, %c1_123] : memref<8x2xf32, #tpu.memory_space<smem>>
    %c0_124 = arith.constant 0 : index
    %72 = memref.load %arg7[%c0_124] : memref<2xf32, #tpu.memory_space<smem>>
    %c1_125 = arith.constant 1 : index
    %73 = memref.load %arg7[%c1_125] : memref<2xf32, #tpu.memory_space<smem>>
    %c0_i32 = arith.constant 0 : i32
    %c1_i32 = arith.constant 1 : i32
    %74 = arith.muli %c0_i32, %c1_i32 : i32
    %c0_i32_126 = arith.constant 0 : i32
    %75 = arith.addi %c0_i32_126, %74 : i32
    %c16_i32 = arith.constant 16 : i32
    %76 = arith.muli %75, %c16_i32 : i32
    %77 = tpu.assume_multiple %76, 16 : i32
    %c0_127 = arith.constant 0 : index
    %78 = arith.index_cast %77 : i32 to index
    %c0_128 = arith.constant 0 : index
    %79 = vector.load %arg1[%c0_127, %78, %c0_128] : memref<3x16x128xf32, #tpu.memory_space<vmem>>, vector<1x16x128xf32>
    %80 = vector.shape_cast %79 : vector<1x16x128xf32> to vector<16x128xf32>
    %c1_129 = arith.constant 1 : index
    %81 = arith.index_cast %77 : i32 to index
    %c0_130 = arith.constant 0 : index
    %82 = vector.load %arg1[%c1_129, %81, %c0_130] : memref<3x16x128xf32, #tpu.memory_space<vmem>>, vector<1x16x128xf32>
    %83 = vector.shape_cast %82 : vector<1x16x128xf32> to vector<16x128xf32>
    %c2_131 = arith.constant 2 : index
    %84 = arith.index_cast %77 : i32 to index
    %c0_132 = arith.constant 0 : index
    %85 = vector.load %arg1[%c2_131, %84, %c0_132] : memref<3x16x128xf32, #tpu.memory_space<vmem>>, vector<1x16x128xf32>
    %86 = vector.shape_cast %85 : vector<1x16x128xf32> to vector<16x128xf32>
    %87 = vector.broadcast %0 : f32 to vector<16x128xf32>
    %88 = arith.mulf %80, %87 : vector<16x128xf32>
    %89 = vector.broadcast %4 : f32 to vector<16x128xf32>
    %90 = arith.mulf %83, %89 : vector<16x128xf32>
    %91 = arith.addf %88, %90 : vector<16x128xf32>
    %92 = vector.broadcast %8 : f32 to vector<16x128xf32>
    %93 = arith.mulf %86, %92 : vector<16x128xf32>
    %94 = arith.addf %91, %93 : vector<16x128xf32>
    %95 = vector.broadcast %12 : f32 to vector<16x128xf32>
    %96 = arith.addf %94, %95 : vector<16x128xf32>
    %cst = arith.constant 0.000000e+00 : f32
    %97 = vector.broadcast %cst : f32 to vector<16x128xf32>
    %98 = arith.maximumf %96, %97 : vector<16x128xf32>
    %99 = vector.broadcast %1 : f32 to vector<16x128xf32>
    %100 = arith.mulf %80, %99 : vector<16x128xf32>
    %101 = vector.broadcast %5 : f32 to vector<16x128xf32>
    %102 = arith.mulf %83, %101 : vector<16x128xf32>
    %103 = arith.addf %100, %102 : vector<16x128xf32>
    %104 = vector.broadcast %9 : f32 to vector<16x128xf32>
    %105 = arith.mulf %86, %104 : vector<16x128xf32>
    %106 = arith.addf %103, %105 : vector<16x128xf32>
    %107 = vector.broadcast %13 : f32 to vector<16x128xf32>
    %108 = arith.addf %106, %107 : vector<16x128xf32>
    %cst_133 = arith.constant 0.000000e+00 : f32
    %109 = vector.broadcast %cst_133 : f32 to vector<16x128xf32>
    %110 = arith.maximumf %108, %109 : vector<16x128xf32>
    %111 = vector.broadcast %2 : f32 to vector<16x128xf32>
    %112 = arith.mulf %80, %111 : vector<16x128xf32>
    %113 = vector.broadcast %6 : f32 to vector<16x128xf32>
    %114 = arith.mulf %83, %113 : vector<16x128xf32>
    %115 = arith.addf %112, %114 : vector<16x128xf32>
    %116 = vector.broadcast %10 : f32 to vector<16x128xf32>
    %117 = arith.mulf %86, %116 : vector<16x128xf32>
    %118 = arith.addf %115, %117 : vector<16x128xf32>
    %119 = vector.broadcast %14 : f32 to vector<16x128xf32>
    %120 = arith.addf %118, %119 : vector<16x128xf32>
    %cst_134 = arith.constant 0.000000e+00 : f32
    %121 = vector.broadcast %cst_134 : f32 to vector<16x128xf32>
    %122 = arith.maximumf %120, %121 : vector<16x128xf32>
    %123 = vector.broadcast %3 : f32 to vector<16x128xf32>
    %124 = arith.mulf %80, %123 : vector<16x128xf32>
    %125 = vector.broadcast %7 : f32 to vector<16x128xf32>
    %126 = arith.mulf %83, %125 : vector<16x128xf32>
    %127 = arith.addf %124, %126 : vector<16x128xf32>
    %128 = vector.broadcast %11 : f32 to vector<16x128xf32>
    %129 = arith.mulf %86, %128 : vector<16x128xf32>
    %130 = arith.addf %127, %129 : vector<16x128xf32>
    %131 = vector.broadcast %15 : f32 to vector<16x128xf32>
    %132 = arith.addf %130, %131 : vector<16x128xf32>
    %cst_135 = arith.constant 0.000000e+00 : f32
    %133 = vector.broadcast %cst_135 : f32 to vector<16x128xf32>
    %134 = arith.maximumf %132, %133 : vector<16x128xf32>
    %135 = vector.broadcast %16 : f32 to vector<16x128xf32>
    %136 = arith.mulf %98, %135 : vector<16x128xf32>
    %137 = vector.broadcast %24 : f32 to vector<16x128xf32>
    %138 = arith.mulf %110, %137 : vector<16x128xf32>
    %139 = arith.addf %136, %138 : vector<16x128xf32>
    %140 = vector.broadcast %32 : f32 to vector<16x128xf32>
    %141 = arith.mulf %122, %140 : vector<16x128xf32>
    %142 = arith.addf %139, %141 : vector<16x128xf32>
    %143 = vector.broadcast %40 : f32 to vector<16x128xf32>
    %144 = arith.mulf %134, %143 : vector<16x128xf32>
    %145 = arith.addf %142, %144 : vector<16x128xf32>
    %146 = vector.broadcast %48 : f32 to vector<16x128xf32>
    %147 = arith.addf %145, %146 : vector<16x128xf32>
    %cst_136 = arith.constant 0.000000e+00 : f32
    %148 = vector.broadcast %cst_136 : f32 to vector<16x128xf32>
    %149 = arith.maximumf %147, %148 : vector<16x128xf32>
    %150 = vector.broadcast %17 : f32 to vector<16x128xf32>
    %151 = arith.mulf %98, %150 : vector<16x128xf32>
    %152 = vector.broadcast %25 : f32 to vector<16x128xf32>
    %153 = arith.mulf %110, %152 : vector<16x128xf32>
    %154 = arith.addf %151, %153 : vector<16x128xf32>
    %155 = vector.broadcast %33 : f32 to vector<16x128xf32>
    %156 = arith.mulf %122, %155 : vector<16x128xf32>
    %157 = arith.addf %154, %156 : vector<16x128xf32>
    %158 = vector.broadcast %41 : f32 to vector<16x128xf32>
    %159 = arith.mulf %134, %158 : vector<16x128xf32>
    %160 = arith.addf %157, %159 : vector<16x128xf32>
    %161 = vector.broadcast %49 : f32 to vector<16x128xf32>
    %162 = arith.addf %160, %161 : vector<16x128xf32>
    %cst_137 = arith.constant 0.000000e+00 : f32
    %163 = vector.broadcast %cst_137 : f32 to vector<16x128xf32>
    %164 = arith.maximumf %162, %163 : vector<16x128xf32>
    %165 = vector.broadcast %18 : f32 to vector<16x128xf32>
    %166 = arith.mulf %98, %165 : vector<16x128xf32>
    %167 = vector.broadcast %26 : f32 to vector<16x128xf32>
    %168 = arith.mulf %110, %167 : vector<16x128xf32>
    %169 = arith.addf %166, %168 : vector<16x128xf32>
    %170 = vector.broadcast %34 : f32 to vector<16x128xf32>
    %171 = arith.mulf %122, %170 : vector<16x128xf32>
    %172 = arith.addf %169, %171 : vector<16x128xf32>
    %173 = vector.broadcast %42 : f32 to vector<16x128xf32>
    %174 = arith.mulf %134, %173 : vector<16x128xf32>
    %175 = arith.addf %172, %174 : vector<16x128xf32>
    %176 = vector.broadcast %50 : f32 to vector<16x128xf32>
    %177 = arith.addf %175, %176 : vector<16x128xf32>
    %cst_138 = arith.constant 0.000000e+00 : f32
    %178 = vector.broadcast %cst_138 : f32 to vector<16x128xf32>
    %179 = arith.maximumf %177, %178 : vector<16x128xf32>
    %180 = vector.broadcast %19 : f32 to vector<16x128xf32>
    %181 = arith.mulf %98, %180 : vector<16x128xf32>
    %182 = vector.broadcast %27 : f32 to vector<16x128xf32>
    %183 = arith.mulf %110, %182 : vector<16x128xf32>
    %184 = arith.addf %181, %183 : vector<16x128xf32>
    %185 = vector.broadcast %35 : f32 to vector<16x128xf32>
    %186 = arith.mulf %122, %185 : vector<16x128xf32>
    %187 = arith.addf %184, %186 : vector<16x128xf32>
    %188 = vector.broadcast %43 : f32 to vector<16x128xf32>
    %189 = arith.mulf %134, %188 : vector<16x128xf32>
    %190 = arith.addf %187, %189 : vector<16x128xf32>
    %191 = vector.broadcast %51 : f32 to vector<16x128xf32>
    %192 = arith.addf %190, %191 : vector<16x128xf32>
    %cst_139 = arith.constant 0.000000e+00 : f32
    %193 = vector.broadcast %cst_139 : f32 to vector<16x128xf32>
    %194 = arith.maximumf %192, %193 : vector<16x128xf32>
    %195 = vector.broadcast %20 : f32 to vector<16x128xf32>
    %196 = arith.mulf %98, %195 : vector<16x128xf32>
    %197 = vector.broadcast %28 : f32 to vector<16x128xf32>
    %198 = arith.mulf %110, %197 : vector<16x128xf32>
    %199 = arith.addf %196, %198 : vector<16x128xf32>
    %200 = vector.broadcast %36 : f32 to vector<16x128xf32>
    %201 = arith.mulf %122, %200 : vector<16x128xf32>
    %202 = arith.addf %199, %201 : vector<16x128xf32>
    %203 = vector.broadcast %44 : f32 to vector<16x128xf32>
    %204 = arith.mulf %134, %203 : vector<16x128xf32>
    %205 = arith.addf %202, %204 : vector<16x128xf32>
    %206 = vector.broadcast %52 : f32 to vector<16x128xf32>
    %207 = arith.addf %205, %206 : vector<16x128xf32>
    %cst_140 = arith.constant 0.000000e+00 : f32
    %208 = vector.broadcast %cst_140 : f32 to vector<16x128xf32>
    %209 = arith.maximumf %207, %208 : vector<16x128xf32>
    %210 = vector.broadcast %21 : f32 to vector<16x128xf32>
    %211 = arith.mulf %98, %210 : vector<16x128xf32>
    %212 = vector.broadcast %29 : f32 to vector<16x128xf32>
    %213 = arith.mulf %110, %212 : vector<16x128xf32>
    %214 = arith.addf %211, %213 : vector<16x128xf32>
    %215 = vector.broadcast %37 : f32 to vector<16x128xf32>
    %216 = arith.mulf %122, %215 : vector<16x128xf32>
    %217 = arith.addf %214, %216 : vector<16x128xf32>
    %218 = vector.broadcast %45 : f32 to vector<16x128xf32>
    %219 = arith.mulf %134, %218 : vector<16x128xf32>
    %220 = arith.addf %217, %219 : vector<16x128xf32>
    %221 = vector.broadcast %53 : f32 to vector<16x128xf32>
    %222 = arith.addf %220, %221 : vector<16x128xf32>
    %cst_141 = arith.constant 0.000000e+00 : f32
    %223 = vector.broadcast %cst_141 : f32 to vector<16x128xf32>
    %224 = arith.maximumf %222, %223 : vector<16x128xf32>
    %225 = vector.broadcast %22 : f32 to vector<16x128xf32>
    %226 = arith.mulf %98, %225 : vector<16x128xf32>
    %227 = vector.broadcast %30 : f32 to vector<16x128xf32>
    %228 = arith.mulf %110, %227 : vector<16x128xf32>
    %229 = arith.addf %226, %228 : vector<16x128xf32>
    %230 = vector.broadcast %38 : f32 to vector<16x128xf32>
    %231 = arith.mulf %122, %230 : vector<16x128xf32>
    %232 = arith.addf %229, %231 : vector<16x128xf32>
    %233 = vector.broadcast %46 : f32 to vector<16x128xf32>
    %234 = arith.mulf %134, %233 : vector<16x128xf32>
    %235 = arith.addf %232, %234 : vector<16x128xf32>
    %236 = vector.broadcast %54 : f32 to vector<16x128xf32>
    %237 = arith.addf %235, %236 : vector<16x128xf32>
    %cst_142 = arith.constant 0.000000e+00 : f32
    %238 = vector.broadcast %cst_142 : f32 to vector<16x128xf32>
    %239 = arith.maximumf %237, %238 : vector<16x128xf32>
    %240 = vector.broadcast %23 : f32 to vector<16x128xf32>
    %241 = arith.mulf %98, %240 : vector<16x128xf32>
    %242 = vector.broadcast %31 : f32 to vector<16x128xf32>
    %243 = arith.mulf %110, %242 : vector<16x128xf32>
    %244 = arith.addf %241, %243 : vector<16x128xf32>
    %245 = vector.broadcast %39 : f32 to vector<16x128xf32>
    %246 = arith.mulf %122, %245 : vector<16x128xf32>
    %247 = arith.addf %244, %246 : vector<16x128xf32>
    %248 = vector.broadcast %47 : f32 to vector<16x128xf32>
    %249 = arith.mulf %134, %248 : vector<16x128xf32>
    %250 = arith.addf %247, %249 : vector<16x128xf32>
    %251 = vector.broadcast %55 : f32 to vector<16x128xf32>
    %252 = arith.addf %250, %251 : vector<16x128xf32>
    %cst_143 = arith.constant 0.000000e+00 : f32
    %253 = vector.broadcast %cst_143 : f32 to vector<16x128xf32>
    %254 = arith.maximumf %252, %253 : vector<16x128xf32>
    %255 = vector.broadcast %56 : f32 to vector<16x128xf32>
    %256 = arith.mulf %149, %255 : vector<16x128xf32>
    %257 = vector.broadcast %58 : f32 to vector<16x128xf32>
    %258 = arith.mulf %164, %257 : vector<16x128xf32>
    %259 = arith.addf %256, %258 : vector<16x128xf32>
    %260 = vector.broadcast %60 : f32 to vector<16x128xf32>
    %261 = arith.mulf %179, %260 : vector<16x128xf32>
    %262 = arith.addf %259, %261 : vector<16x128xf32>
    %263 = vector.broadcast %62 : f32 to vector<16x128xf32>
    %264 = arith.mulf %194, %263 : vector<16x128xf32>
    %265 = arith.addf %262, %264 : vector<16x128xf32>
    %266 = vector.broadcast %64 : f32 to vector<16x128xf32>
    %267 = arith.mulf %209, %266 : vector<16x128xf32>
    %268 = arith.addf %265, %267 : vector<16x128xf32>
    %269 = vector.broadcast %66 : f32 to vector<16x128xf32>
    %270 = arith.mulf %224, %269 : vector<16x128xf32>
    %271 = arith.addf %268, %270 : vector<16x128xf32>
    %272 = vector.broadcast %68 : f32 to vector<16x128xf32>
    %273 = arith.mulf %239, %272 : vector<16x128xf32>
    %274 = arith.addf %271, %273 : vector<16x128xf32>
    %275 = vector.broadcast %70 : f32 to vector<16x128xf32>
    %276 = arith.mulf %254, %275 : vector<16x128xf32>
    %277 = arith.addf %274, %276 : vector<16x128xf32>
    %278 = vector.broadcast %72 : f32 to vector<16x128xf32>
    %279 = arith.addf %277, %278 : vector<16x128xf32>
    %280 = vector.broadcast %57 : f32 to vector<16x128xf32>
    %281 = arith.mulf %149, %280 : vector<16x128xf32>
    %282 = vector.broadcast %59 : f32 to vector<16x128xf32>
    %283 = arith.mulf %164, %282 : vector<16x128xf32>
    %284 = arith.addf %281, %283 : vector<16x128xf32>
    %285 = vector.broadcast %61 : f32 to vector<16x128xf32>
    %286 = arith.mulf %179, %285 : vector<16x128xf32>
    %287 = arith.addf %284, %286 : vector<16x128xf32>
    %288 = vector.broadcast %63 : f32 to vector<16x128xf32>
    %289 = arith.mulf %194, %288 : vector<16x128xf32>
    %290 = arith.addf %287, %289 : vector<16x128xf32>
    %291 = vector.broadcast %65 : f32 to vector<16x128xf32>
    %292 = arith.mulf %209, %291 : vector<16x128xf32>
    %293 = arith.addf %290, %292 : vector<16x128xf32>
    %294 = vector.broadcast %67 : f32 to vector<16x128xf32>
    %295 = arith.mulf %224, %294 : vector<16x128xf32>
    %296 = arith.addf %293, %295 : vector<16x128xf32>
    %297 = vector.broadcast %69 : f32 to vector<16x128xf32>
    %298 = arith.mulf %239, %297 : vector<16x128xf32>
    %299 = arith.addf %296, %298 : vector<16x128xf32>
    %300 = vector.broadcast %71 : f32 to vector<16x128xf32>
    %301 = arith.mulf %254, %300 : vector<16x128xf32>
    %302 = arith.addf %299, %301 : vector<16x128xf32>
    %303 = vector.broadcast %73 : f32 to vector<16x128xf32>
    %304 = arith.addf %302, %303 : vector<16x128xf32>
    %305 = arith.subf %279, %304 : vector<16x128xf32>
    %306 = math.exp %305 : vector<16x128xf32>
    %cst_144 = arith.constant 1.000000e+00 : f32
    %307 = vector.broadcast %cst_144 : f32 to vector<16x128xf32>
    %308 = arith.addf %307, %306 : vector<16x128xf32>
    %309 = tpu.reciprocal %308 {approx = true} : vector<16x128xf32> -> vector<16x128xf32>
    %cst_145 = arith.constant 1.000000e+00 : f32
    %310 = vector.broadcast %cst_145 : f32 to vector<16x128xf32>
    %311 = arith.subf %310, %309 : vector<16x128xf32>
    %c0_146 = arith.constant 0 : index
    %312 = arith.index_cast %77 : i32 to index
    %c0_147 = arith.constant 0 : index
    %313 = vector.load %arg8[%c0_146, %312, %c0_147] : memref<2x16x128xf32, #tpu.memory_space<vmem>>, vector<1x16x128xf32>
    %314 = vector.shape_cast %313 : vector<1x16x128xf32> to vector<16x128xf32>
    %315 = vector.shape_cast %311 : vector<16x128xf32> to vector<1x16x128xf32>
    tpu.vector_store %arg8[%c0_146, %312, %c0_147], %315 {strides = array<i32>} : memref<2x16x128xf32, #tpu.memory_space<vmem>>, vector<1x16x128xf32>,
    %c1_148 = arith.constant 1 : index
    %316 = arith.index_cast %77 : i32 to index
    %c0_149 = arith.constant 0 : index
    %317 = vector.load %arg8[%c1_148, %316, %c0_149] : memref<2x16x128xf32, #tpu.memory_space<vmem>>, vector<1x16x128xf32>
    %318 = vector.shape_cast %317 : vector<1x16x128xf32> to vector<16x128xf32>
    %319 = vector.shape_cast %309 : vector<16x128xf32> to vector<1x16x128xf32>
    tpu.vector_store %arg8[%c1_148, %316, %c0_149], %319 {strides = array<i32>} : memref<2x16x128xf32, #tpu.memory_space<vmem>>, vector<1x16x128xf32>,
    %c1_i32_150 = arith.constant 1 : i32
    return
  }
  func.func @transform_0(%arg0: i32) -> (i32, i32, i32) {
    %c0_i32 = arith.constant 0 : i32
    %c0_i32_0 = arith.constant 0 : i32
    %c0_i32_1 = arith.constant 0 : i32
    return %c0_i32, %arg0, %c0_i32_0 : i32, i32, i32
  }
  func.func @transform_1(%arg0: i32) -> (i32, i32) {
    %c0_i32 = arith.constant 0 : i32
    %c0_i32_0 = arith.constant 0 : i32
    %c0_i32_1 = arith.constant 0 : i32
    return %c0_i32, %c0_i32_0 : i32, i32
  }
  func.func @transform_2(%arg0: i32) -> i32 {
    %c0_i32 = arith.constant 0 : i32
    %c0_i32_0 = arith.constant 0 : i32
    return %c0_i32 : i32
  }
  func.func @transform_3(%arg0: i32) -> (i32, i32) {
    %c0_i32 = arith.constant 0 : i32
    %c0_i32_0 = arith.constant 0 : i32
    %c0_i32_1 = arith.constant 0 : i32
    return %c0_i32, %c0_i32_0 : i32, i32
  }
  func.func @transform_4(%arg0: i32) -> i32 {
    %c0_i32 = arith.constant 0 : i32
    %c0_i32_0 = arith.constant 0 : i32
    return %c0_i32 : i32
  }
  func.func @transform_5(%arg0: i32) -> (i32, i32) {
    %c0_i32 = arith.constant 0 : i32
    %c0_i32_0 = arith.constant 0 : i32
    %c0_i32_1 = arith.constant 0 : i32
    return %c0_i32, %c0_i32_0 : i32, i32
  }
  func.func @transform_6(%arg0: i32) -> i32 {
    %c0_i32 = arith.constant 0 : i32
    %c0_i32_0 = arith.constant 0 : i32
    return %c0_i32 : i32
  }
  func.func @transform_7(%arg0: i32) -> (i32, i32, i32) {
    %c0_i32 = arith.constant 0 : i32
    %c0_i32_0 = arith.constant 0 : i32
    %c0_i32_1 = arith.constant 0 : i32
    return %c0_i32, %arg0, %c0_i32_0 : i32, i32, i32
  }
}

</mosaic_0001>

<llo_original>
// kernel: tpu_custom_call.1
$region0: #{tpu_custom_call.1}
  #allocation0 [shape = 'u32[]', space=smem, size = 0x4, offset = 0x4, fixed_abs, tag = 'smem constant byte address 0x4 - core index']
  #allocation1 [shape = 'u32[144,128]{1,0:T(1,128)}', space=vmem, size = 0x12000, scoped, tag = 'internal scratch']
  %s0 = inlined_call_operand.hbm [shape: f32[3,16,128], index: 0, kind: input, shape index: {}]
  %s1 = inlined_call_operand.vmem [shape: f32[3,4], index: 1, kind: input, shape index: {}]
  %s2 = inlined_call_operand.vmem [shape: f32[4], index: 2, kind: input, shape index: {}]
  %s3 = inlined_call_operand.vmem [shape: f32[4,8], index: 3, kind: input, shape index: {}]
  %s4 = inlined_call_operand.vmem [shape: f32[8], index: 4, kind: input, shape index: {}]
  %s5 = inlined_call_operand.vmem [shape: f32[8,2], index: 5, kind: input, shape index: {}]
  %s6 = inlined_call_operand.vmem [shape: f32[2], index: 6, kind: input, shape index: {}]
  %s7 = inlined_call_operand.hbm [shape: f32[2,16,128], index: 7, kind: output, shape index: {}]
  %s8 = sld [smem:[#allocation0]]
  $region66: #{tpu_custom_call.1} parent=0
    _
  %s10 = ssub.s32 1, %s8
  %s11 = scalar_select 0, %s10, %s8
  $region1: #{tpu_custom_call.1} parent=0
    #allocation2 [shape = 'u8[24576]{0}', space=vmem, size = 0x6000, scoped, tag = 'input window, operand 0, single buffered']
    #allocation3 [shape = 's32[1]{0}', space=sflag, size = 0x4, scoped, tag = 'scoped memory for tpu_custom_call.1']
    #allocation4 [shape = 's32[1]{0}', space=sflag, size = 0x4, scoped, tag = 'scoped memory for tpu_custom_call.1']
    #allocation5 [shape = 's32[1]{0}', space=sflag, size = 0x4, scoped, tag = 'scoped memory for tpu_custom_call.1']
    #allocation6 [shape = 'u8[2048]{0}', space=smem, size = 0x800, scoped, tag = 'input window, operand 1, single buffered']
    #allocation7 [shape = 'u8[512]{0}', space=smem, size = 0x200, scoped, tag = 'input window, operand 2, single buffered']
    #allocation8 [shape = 's32[1]{0}', space=sflag, size = 0x4, scoped, tag = 'scoped memory for tpu_custom_call.1']
    #allocation9 [shape = 'u8[2048]{0}', space=smem, size = 0x800, scoped, tag = 'input window, operand 3, single buffered']
    #allocation10 [shape = 'u8[512]{0}', space=smem, size = 0x200, scoped, tag = 'input window, operand 4, single buffered']
    #allocation11 [shape = 's32[1]{0}', space=sflag, size = 0x4, scoped, tag = 'scoped memory for tpu_custom_call.1']
    #allocation12 [shape = 'u8[4096]{0}', space=smem, size = 0x1000, scoped, tag = 'input window, operand 5, single buffered']
    #allocation13 [shape = 'u8[512]{0}', space=smem, size = 0x200, scoped, tag = 'input window, operand 6, single buffered']
    #allocation14 [shape = 's32[1]{0}', space=sflag, size = 0x4, scoped, tag = 'scoped memory for tpu_custom_call.1']
    #allocation15 [shape = 'u8[16384]{0}', space=vmem, size = 0x4000, scoped, tag = 'output window, operand 0, single buffered']
    %12 = vsyncpa [#allocation3], 0
    %13 = vsyncpa [#allocation5], 0
    %14 = vsyncpa [#allocation8], 0
    %15 = vsyncpa [#allocation11], 0
    %16 = vsyncpa [#allocation14], 0
    %17 = vsyncpa [#allocation4], 0
    // Predicated region
    $region2: #{tpu_custom_call.1} parent=1 // pred_check
      _
    $region3: #{tpu_custom_call.1} parent=1 // pred_check_branch
      %19 = sbr.rel (0) target = $region5
    $region4: #{tpu_custom_call.1} parent=1 // pred_region
      %s21 = ssub.s32 768, 768
      %22 = vsyncadd [#allocation3], %s21
      %s23 = sshll.u32 [#allocation2], 4
      %s24 = int_to_ptr.vmem [resolvable:$true] %s23
      %29 = dma.hbm_to_vmem [thread:$0]  %s0, 768, %s24, [#allocation3], 128, 128, 8
    $region5: #{tpu_custom_call.1} parent=1 // pred_fallthru
      _
    // Predicated region
    $region6: #{tpu_custom_call.1} parent=1 // pred_check
      _
    $region7: #{tpu_custom_call.1} parent=1 // pred_check_branch
      %31 = sbr.rel (0) target = $region9
    $region8: #{tpu_custom_call.1} parent=1 // pred_region
      %s33 = ssub.s32 64, 64
      %34 = vsyncadd [#allocation5], %s33
      %s36 = sshll.u32 %s1, 4
      %s37 = int_to_ptr.vmem [resolvable:$true] %s36
      %39 = dma.vmem_to_smem %s37, 64, [#allocation6], [#allocation5]
    $region9: #{tpu_custom_call.1} parent=1 // pred_fallthru
      _
    // Predicated region
    $region10: #{tpu_custom_call.1} parent=1 // pred_check
      _
    $region11: #{tpu_custom_call.1} parent=1 // pred_check_branch
      %41 = sbr.rel (0) target = $region13
    $region12: #{tpu_custom_call.1} parent=1 // pred_region
      %s43 = ssub.s32 16, 16
      %44 = vsyncadd [#allocation8], %s43
      %s46 = sshll.u32 %s2, 4
      %s47 = int_to_ptr.vmem [resolvable:$true] %s46
      %49 = dma.vmem_to_smem %s47, 16, [#allocation7], [#allocation8]
    $region13: #{tpu_custom_call.1} parent=1 // pred_fallthru
      _
    // Predicated region
    $region14: #{tpu_custom_call.1} parent=1 // pred_check
      _
    $region15: #{tpu_custom_call.1} parent=1 // pred_check_branch
      %51 = sbr.rel (0) target = $region17
    $region16: #{tpu_custom_call.1} parent=1 // pred_region
      %s53 = ssub.s32 64, 64
      %54 = vsyncadd [#allocation8], %s53
      %s56 = sshll.u32 %s3, 4
      %s57 = int_to_ptr.vmem [resolvable:$true] %s56
      %59 = dma.vmem_to_smem %s57, 64, [#allocation9], [#allocation8]
    $region17: #{tpu_custom_call.1} parent=1 // pred_fallthru
      _
    // Predicated region
    $region18: #{tpu_custom_call.1} parent=1 // pred_check
      _
    $region19: #{tpu_custom_call.1} parent=1 // pred_check_branch
      %61 = sbr.rel (0) target = $region21
    $region20: #{tpu_custom_call.1} parent=1 // pred_region
      %s63 = ssub.s32 16, 16
      %64 = vsyncadd [#allocation11], %s63
      %s66 = sshll.u32 %s4, 4
      %s67 = int_to_ptr.vmem [resolvable:$true] %s66
      %69 = dma.vmem_to_smem %s67, 16, [#allocation10], [#allocation11]
    $region21: #{tpu_custom_call.1} parent=1 // pred_fallthru
      _
    // Predicated region
    $region22: #{tpu_custom_call.1} parent=1 // pred_check
      _
    $region23: #{tpu_custom_call.1} parent=1 // pred_check_branch
      %71 = sbr.rel (0) target = $region25
    $region24: #{tpu_custom_call.1} parent=1 // pred_region
      %s73 = ssub.s32 128, 128
      %74 = vsyncadd [#allocation11], %s73
      %s76 = sshll.u32 %s5, 4
      %s77 = int_to_ptr.vmem [resolvable:$true] %s76
      %79 = dma.vmem_to_smem %s77, 128, [#allocation12], [#allocation11]
    $region25: #{tpu_custom_call.1} parent=1 // pred_fallthru
      _
    // Predicated region
    $region26: #{tpu_custom_call.1} parent=1 // pred_check
      _
    $region27: #{tpu_custom_call.1} parent=1 // pred_check_branch
      %81 = sbr.rel (0) target = $region29
    $region28: #{tpu_custom_call.1} parent=1 // pred_region
      %s83 = ssub.s32 16, 16
      %84 = vsyncadd [#allocation14], %s83
      %s86 = sshll.u32 %s6, 4
      %s87 = int_to_ptr.vmem [resolvable:$true] %s86
      %89 = dma.vmem_to_smem %s87, 16, [#allocation13], [#allocation14]
    $region29: #{tpu_custom_call.1} parent=1 // pred_fallthru
      _
    // Predicated region
    $region30: #{tpu_custom_call.1} parent=1 // pred_check
      _
    $region31: #{tpu_custom_call.1} parent=1 // pred_check_branch
      %91 = sbr.rel (0) target = $region33
    $region32: #{tpu_custom_call.1} parent=1 // pred_region
      %92 = dma.done [#allocation3], 768
    $region33: #{tpu_custom_call.1} parent=1 // pred_fallthru
      _
    // Predicated region
    $region34: #{tpu_custom_call.1} parent=1 // pred_check
      _
    $region35: #{tpu_custom_call.1} parent=1 // pred_check_branch
      %94 = sbr.rel (0) target = $region37
    $region36: #{tpu_custom_call.1} parent=1 // pred_region
      %95 = dma.done [#allocation5], 64
    $region37: #{tpu_custom_call.1} parent=1 // pred_fallthru
      _
    // Predicated region
    $region38: #{tpu_custom_call.1} parent=1 // pred_check
      _
    $region39: #{tpu_custom_call.1} parent=1 // pred_check_branch
      %97 = sbr.rel (0) target = $region41
    $region40: #{tpu_custom_call.1} parent=1 // pred_region
      %98 = dma.done [#allocation8], 16
    $region41: #{tpu_custom_call.1} parent=1 // pred_fallthru
      _
    // Predicated region
    $region42: #{tpu_custom_call.1} parent=1 // pred_check
      _
    $region43: #{tpu_custom_call.1} parent=1 // pred_check_branch
      %100 = sbr.rel (0) target = $region45
    $region44: #{tpu_custom_call.1} parent=1 // pred_region
      %101 = dma.done [#allocation8], 64
    $region45: #{tpu_custom_call.1} parent=1 // pred_fallthru
      _
    // Predicated region
    $region46: #{tpu_custom_call.1} parent=1 // pred_check
      _
    $region47: #{tpu_custom_call.1} parent=1 // pred_check_branch
      %103 = sbr.rel (0) target = $region49
    $region48: #{tpu_custom_call.1} parent=1 // pred_region
      %104 = dma.done [#allocation11], 16
    $region49: #{tpu_custom_call.1} parent=1 // pred_fallthru
      _
    // Predicated region
    $region50: #{tpu_custom_call.1} parent=1 // pred_check
      _
    $region51: #{tpu_custom_call.1} parent=1 // pred_check_branch
      %106 = sbr.rel (0) target = $region53
    $region52: #{tpu_custom_call.1} parent=1 // pred_region
      %107 = dma.done [#allocation11], 128
    $region53: #{tpu_custom_call.1} parent=1 // pred_fallthru
      _
    // Predicated region
    $region54: #{tpu_custom_call.1} parent=1 // pred_check
      _
    $region55: #{tpu_custom_call.1} parent=1 // pred_check_branch
      %109 = sbr.rel (0) target = $region57
    $region56: #{tpu_custom_call.1} parent=1 // pred_region
      %110 = dma.done [#allocation14], 16
    $region57: #{tpu_custom_call.1} parent=1 // pred_fallthru
      _
    %111 = sfence
    %s112 = sld [smem:[#allocation6]]
    %s113 = sld [smem:[#allocation6 + $0x1]]
    %s114 = sld [smem:[#allocation6 + $0x2]]
    %s115 = sld [smem:[#allocation6 + $0x3]]
    %s116 = sld [smem:[#allocation6 + $0x80]]
    %s117 = sld [smem:[#allocation6 + $0x81]]
    %s118 = sld [smem:[#allocation6 + $0x82]]
    %s119 = sld [smem:[#allocation6 + $0x83]]
    %s120 = sld [smem:[#allocation6 + $0x100]]
    %s121 = sld [smem:[#allocation6 + $0x101]]
    %s122 = sld [smem:[#allocation6 + $0x102]]
    %s123 = sld [smem:[#allocation6 + $0x103]]
    %s124 = sld [smem:[#allocation7]]
    %s125 = sld [smem:[#allocation7 + $0x1]]
    %s126 = sld [smem:[#allocation7 + $0x2]]
    %s127 = sld [smem:[#allocation7 + $0x3]]
    %s128 = sld [smem:[#allocation9]]
    %s129 = sld [smem:[#allocation9 + $0x1]]
    %s130 = sld [smem:[#allocation9 + $0x2]]
    %s131 = sld [smem:[#allocation9 + $0x3]]
    %s132 = sld [smem:[#allocation9 + $0x4]]
    %s133 = sld [smem:[#allocation9 + $0x5]]
    %s134 = sld [smem:[#allocation9 + $0x6]]
    %s135 = sld [smem:[#allocation9 + $0x7]]
    %s136 = sld [smem:[#allocation9 + $0x80]]
    %s137 = sld [smem:[#allocation9 + $0x81]]
    %s138 = sld [smem:[#allocation9 + $0x82]]
    %s139 = sld [smem:[#allocation9 + $0x83]]
    %s140 = sld [smem:[#allocation9 + $0x84]]
    %s141 = sld [smem:[#allocation9 + $0x85]]
    %s142 = sld [smem:[#allocation9 + $0x86]]
    %s143 = sld [smem:[#allocation9 + $0x87]]
    %s144 = sld [smem:[#allocation9 + $0x100]]
    %s145 = sld [smem:[#allocation9 + $0x101]]
    %s146 = sld [smem:[#allocation9 + $0x102]]
    %s147 = sld [smem:[#allocation9 + $0x103]]
    %s148 = sld [smem:[#allocation9 + $0x104]]
    %s149 = sld [smem:[#allocation9 + $0x105]]
    %s150 = sld [smem:[#allocation9 + $0x106]]
    %s151 = sld [smem:[#allocation9 + $0x107]]
    %s152 = sld [smem:[#allocation9 + $0x180]]
    %s153 = sld [smem:[#allocation9 + $0x181]]
    %s154 = sld [smem:[#allocation9 + $0x182]]
    %s155 = sld [smem:[#allocation9 + $0x183]]
    %s156 = sld [smem:[#allocation9 + $0x184]]
    %s157 = sld [smem:[#allocation9 + $0x185]]
    %s158 = sld [smem:[#allocation9 + $0x186]]
    %s159 = sld [smem:[#allocation9 + $0x187]]
    %s160 = sld [smem:[#allocation10]]
    %s161 = sld [smem:[#allocation10 + $0x1]]
    %s162 = sld [smem:[#allocation10 + $0x2]]
    %s163 = sld [smem:[#allocation10 + $0x3]]
    %s164 = sld [smem:[#allocation10 + $0x4]]
    %s165 = sld [smem:[#allocation10 + $0x5]]
    %s166 = sld [smem:[#allocation10 + $0x6]]
    %s167 = sld [smem:[#allocation10 + $0x7]]
    %s168 = sld [smem:[#allocation12]]
    %s169 = sld [smem:[#allocation12 + $0x1]]
    %s170 = sld [smem:[#allocation12 + $0x80]]
    %s171 = sld [smem:[#allocation12 + $0x81]]
    %s172 = sld [smem:[#allocation12 + $0x100]]
    %s173 = sld [smem:[#allocation12 + $0x101]]
    %s174 = sld [smem:[#allocation12 + $0x180]]
    %s175 = sld [smem:[#allocation12 + $0x181]]
    %s176 = sld [smem:[#allocation12 + $0x200]]
    %s177 = sld [smem:[#allocation12 + $0x201]]
    %s178 = sld [smem:[#allocation12 + $0x280]]
    %s179 = sld [smem:[#allocation12 + $0x281]]
    %s180 = sld [smem:[#allocation12 + $0x300]]
    %s181 = sld [smem:[#allocation12 + $0x301]]
    %s182 = sld [smem:[#allocation12 + $0x380]]
    %s183 = sld [smem:[#allocation12 + $0x381]]
    %s184 = sld [smem:[#allocation13]]
    %s185 = sld [smem:[#allocation13 + $0x1]]
    %v186 = vld [vmem:[#allocation2] sm:$0xff]
    %v187 = vld [vmem:[#allocation2 + $0x8] sm:$0xff]
    %s188 = sadd.s32 0, 16
    %s189 = scalar_lea.vmem [#allocation2], %s188
    %v190 = vld [vmem:[%s189] sm:$0xff]
    %v191 = vld [vmem:[%s189 + $0x8] sm:$0xff]
    %s192 = sadd.s32 0, 32
    %s193 = scalar_lea.vmem [#allocation2], %s192
    %v194 = vld [vmem:[%s193] sm:$0xff]
    %v195 = vld [vmem:[%s193 + $0x8] sm:$0xff]
    %v196 = vstv %s112
    %v197 = vmul.f32 %v186, %v196
    %v198 = vmul.f32 %v187, %v196
    %v199 = vstv %s116
    %v200 = vmul.f32 %v190, %v199
    %v201 = vmul.f32 %v191, %v199
    %v202 = vadd.f32 %v197, %v200
    %v203 = vadd.f32 %v198, %v201
    %v204 = vstv %s120
    %v205 = vmul.f32 %v194, %v204
    %v206 = vmul.f32 %v195, %v204
    %v207 = vadd.f32 %v202, %v205
    %v208 = vadd.f32 %v203, %v206
    %v209 = vstv %s124
    %v210 = vadd.f32 %v207, %v209
    %v211 = vadd.f32 %v208, %v209
    %v212 = vmax.f32 %v210, 0.0
    %v213 = vmax.f32 %v211, 0.0
    %v214 = vstv %s113
    %v215 = vmul.f32 %v186, %v214
    %v216 = vmul.f32 %v187, %v214
    %v217 = vstv %s117
    %v218 = vmul.f32 %v190, %v217
    %v219 = vmul.f32 %v191, %v217
    %v220 = vadd.f32 %v215, %v218
    %v221 = vadd.f32 %v216, %v219
    %v222 = vstv %s121
    %v223 = vmul.f32 %v194, %v222
    %v224 = vmul.f32 %v195, %v222
    %v225 = vadd.f32 %v220, %v223
    %v226 = vadd.f32 %v221, %v224
    %v227 = vstv %s125
    %v228 = vadd.f32 %v225, %v227
    %v229 = vadd.f32 %v226, %v227
    %v230 = vmax.f32 %v228, 0.0
    %v231 = vmax.f32 %v229, 0.0
    %v232 = vstv %s114
    %v233 = vmul.f32 %v186, %v232
    %v234 = vmul.f32 %v187, %v232
    %v235 = vstv %s118
    %v236 = vmul.f32 %v190, %v235
    %v237 = vmul.f32 %v191, %v235
    %v238 = vadd.f32 %v233, %v236
    %v239 = vadd.f32 %v234, %v237
    %v240 = vstv %s122
    %v241 = vmul.f32 %v194, %v240
    %v242 = vmul.f32 %v195, %v240
    %v243 = vadd.f32 %v238, %v241
    %v244 = vadd.f32 %v239, %v242
    %v245 = vstv %s126
    %v246 = vadd.f32 %v243, %v245
    %v247 = vadd.f32 %v244, %v245
    %v248 = vmax.f32 %v246, 0.0
    %v249 = vmax.f32 %v247, 0.0
    %v250 = vstv %s115
    %v251 = vmul.f32 %v186, %v250
    %v252 = vmul.f32 %v187, %v250
    %v253 = vstv %s119
    %v254 = vmul.f32 %v190, %v253
    %v255 = vmul.f32 %v191, %v253
    %v256 = vadd.f32 %v251, %v254
    %v257 = vadd.f32 %v252, %v255
    %v258 = vstv %s123
    %v259 = vmul.f32 %v194, %v258
    %v260 = vmul.f32 %v195, %v258
    %v261 = vadd.f32 %v256, %v259
    %v262 = vadd.f32 %v257, %v260
    %v263 = vstv %s127
    %v264 = vadd.f32 %v261, %v263
    %v265 = vadd.f32 %v262, %v263
    %v266 = vmax.f32 %v264, 0.0
    %v267 = vmax.f32 %v265, 0.0
    %v268 = vstv %s128
    %v269 = vmul.f32 %v212, %v268
    %v270 = vmul.f32 %v213, %v268
    %v271 = vstv %s136
    %v272 = vmul.f32 %v230, %v271
    %v273 = vmul.f32 %v231, %v271
    %v274 = vadd.f32 %v269, %v272
    %v275 = vadd.f32 %v270, %v273
    %v276 = vstv %s144
    %v277 = vmul.f32 %v248, %v276
    %v278 = vmul.f32 %v249, %v276
    %v279 = vadd.f32 %v274, %v277
    %v280 = vadd.f32 %v275, %v278
    %v281 = vstv %s152
    %v282 = vmul.f32 %v266, %v281
    %v283 = vmul.f32 %v267, %v281
    %v284 = vadd.f32 %v279, %v282
    %v285 = vadd.f32 %v280, %v283
    %v286 = vstv %s160
    %v287 = vadd.f32 %v284, %v286
    %v288 = vadd.f32 %v285, %v286
    %v289 = vmax.f32 %v287, 0.0
    %v290 = vmax.f32 %v288, 0.0
    %v291 = vstv %s129
    %v292 = vmul.f32 %v212, %v291
    %v293 = vmul.f32 %v213, %v291
    %v294 = vstv %s137
    %v295 = vmul.f32 %v230, %v294
    %v296 = vmul.f32 %v231, %v294
    %v297 = vadd.f32 %v292, %v295
    %v298 = vadd.f32 %v293, %v296
    %v299 = vstv %s145
    %v300 = vmul.f32 %v248, %v299
    %v301 = vmul.f32 %v249, %v299
    %v302 = vadd.f32 %v297, %v300
    %v303 = vadd.f32 %v298, %v301
    %v304 = vstv %s153
    %v305 = vmul.f32 %v266, %v304
    %v306 = vmul.f32 %v267, %v304
    %v307 = vadd.f32 %v302, %v305
    %v308 = vadd.f32 %v303, %v306
    %v309 = vstv %s161
    %v310 = vadd.f32 %v307, %v309
    %v311 = vadd.f32 %v308, %v309
    %v312 = vmax.f32 %v310, 0.0
    %v313 = vmax.f32 %v311, 0.0
    %v314 = vstv %s130
    %v315 = vmul.f32 %v212, %v314
    %v316 = vmul.f32 %v213, %v314
    %v317 = vstv %s138
    %v318 = vmul.f32 %v230, %v317
    %v319 = vmul.f32 %v231, %v317
    %v320 = vadd.f32 %v315, %v318
    %v321 = vadd.f32 %v316, %v319
    %v322 = vstv %s146
    %v323 = vmul.f32 %v248, %v322
    %v324 = vmul.f32 %v249, %v322
    %v325 = vadd.f32 %v320, %v323
    %v326 = vadd.f32 %v321, %v324
    %v327 = vstv %s154
    %v328 = vmul.f32 %v266, %v327
    %v329 = vmul.f32 %v267, %v327
    %v330 = vadd.f32 %v325, %v328
    %v331 = vadd.f32 %v326, %v329
    %v332 = vstv %s162
    %v333 = vadd.f32 %v330, %v332
    %v334 = vadd.f32 %v331, %v332
    %v335 = vmax.f32 %v333, 0.0
    %v336 = vmax.f32 %v334, 0.0
    %v337 = vstv %s131
    %v338 = vmul.f32 %v212, %v337
    %v339 = vmul.f32 %v213, %v337
    %v340 = vstv %s139
    %v341 = vmul.f32 %v230, %v340
    %v342 = vmul.f32 %v231, %v340
    %v343 = vadd.f32 %v338, %v341
    %v344 = vadd.f32 %v339, %v342
    %v345 = vstv %s147
    %v346 = vmul.f32 %v248, %v345
    %v347 = vmul.f32 %v249, %v345
    %v348 = vadd.f32 %v343, %v346
    %v349 = vadd.f32 %v344, %v347
    %v350 = vstv %s155
    %v351 = vmul.f32 %v266, %v350
    %v352 = vmul.f32 %v267, %v350
    %v353 = vadd.f32 %v348, %v351
    %v354 = vadd.f32 %v349, %v352
    %v355 = vstv %s163
    %v356 = vadd.f32 %v353, %v355
    %v357 = vadd.f32 %v354, %v355
    %v358 = vmax.f32 %v356, 0.0
    %v359 = vmax.f32 %v357, 0.0
    %v360 = vstv %s132
    %v361 = vmul.f32 %v212, %v360
    %v362 = vmul.f32 %v213, %v360
    %v363 = vstv %s140
    %v364 = vmul.f32 %v230, %v363
    %v365 = vmul.f32 %v231, %v363
    %v366 = vadd.f32 %v361, %v364
    %v367 = vadd.f32 %v362, %v365
    %v368 = vstv %s148
    %v369 = vmul.f32 %v248, %v368
    %v370 = vmul.f32 %v249, %v368
    %v371 = vadd.f32 %v366, %v369
    %v372 = vadd.f32 %v367, %v370
    %v373 = vstv %s156
    %v374 = vmul.f32 %v266, %v373
    %v375 = vmul.f32 %v267, %v373
    %v376 = vadd.f32 %v371, %v374
    %v377 = vadd.f32 %v372, %v375
    %v378 = vstv %s164
    %v379 = vadd.f32 %v376, %v378
    %v380 = vadd.f32 %v377, %v378
    %v381 = vmax.f32 %v379, 0.0
    %v382 = vmax.f32 %v380, 0.0
    %v383 = vstv %s133
    %v384 = vmul.f32 %v212, %v383
    %v385 = vmul.f32 %v213, %v383
    %v386 = vstv %s141
    %v387 = vmul.f32 %v230, %v386
    %v388 = vmul.f32 %v231, %v386
    %v389 = vadd.f32 %v384, %v387
    %v390 = vadd.f32 %v385, %v388
    %v391 = vstv %s149
    %v392 = vmul.f32 %v248, %v391
    %v393 = vmul.f32 %v249, %v391
    %v394 = vadd.f32 %v389, %v392
    %v395 = vadd.f32 %v390, %v393
    %v396 = vstv %s157
    %v397 = vmul.f32 %v266, %v396
    %v398 = vmul.f32 %v267, %v396
    %v399 = vadd.f32 %v394, %v397
    %v400 = vadd.f32 %v395, %v398
    %v401 = vstv %s165
    %v402 = vadd.f32 %v399, %v401
    %v403 = vadd.f32 %v400, %v401
    %v404 = vmax.f32 %v402, 0.0
    %v405 = vmax.f32 %v403, 0.0
    %v406 = vstv %s134
    %v407 = vmul.f32 %v212, %v406
    %v408 = vmul.f32 %v213, %v406
    %v409 = vstv %s142
    %v410 = vmul.f32 %v230, %v409
    %v411 = vmul.f32 %v231, %v409
    %v412 = vadd.f32 %v407, %v410
    %v413 = vadd.f32 %v408, %v411
    %v414 = vstv %s150
    %v415 = vmul.f32 %v248, %v414
    %v416 = vmul.f32 %v249, %v414
    %v417 = vadd.f32 %v412, %v415
    %v418 = vadd.f32 %v413, %v416
    %v419 = vstv %s158
    %v420 = vmul.f32 %v266, %v419
    %v421 = vmul.f32 %v267, %v419
    %v422 = vadd.f32 %v417, %v420
    %v423 = vadd.f32 %v418, %v421
    %v424 = vstv %s166
    %v425 = vadd.f32 %v422, %v424
    %v426 = vadd.f32 %v423, %v424
    %v427 = vmax.f32 %v425, 0.0
    %v428 = vmax.f32 %v426, 0.0
    %v429 = vstv %s135
    %v430 = vmul.f32 %v212, %v429
    %v431 = vmul.f32 %v213, %v429
    %v432 = vstv %s143
    %v433 = vmul.f32 %v230, %v432
    %v434 = vmul.f32 %v231, %v432
    %v435 = vadd.f32 %v430, %v433
    %v436 = vadd.f32 %v431, %v434
    %v437 = vstv %s151
    %v438 = vmul.f32 %v248, %v437
    %v439 = vmul.f32 %v249, %v437
    %v440 = vadd.f32 %v435, %v438
    %v441 = vadd.f32 %v436, %v439
    %v442 = vstv %s159
    %v443 = vmul.f32 %v266, %v442
    %v444 = vmul.f32 %v267, %v442
    %v445 = vadd.f32 %v440, %v443
    %v446 = vadd.f32 %v441, %v444
    %v447 = vstv %s167
    %v448 = vadd.f32 %v445, %v447
    %v449 = vadd.f32 %v446, %v447
    %v450 = vmax.f32 %v448, 0.0
    %v451 = vmax.f32 %v449, 0.0
    %v452 = vstv %s168
    %v453 = vmul.f32 %v289, %v452
    %v454 = vmul.f32 %v290, %v452
    %v455 = vstv %s170
    %v456 = vmul.f32 %v312, %v455
    %v457 = vmul.f32 %v313, %v455
    %v458 = vadd.f32 %v453, %v456
    %v459 = vadd.f32 %v454, %v457
    %v460 = vstv %s172
    %v461 = vmul.f32 %v335, %v460
    %v462 = vmul.f32 %v336, %v460
    %v463 = vadd.f32 %v458, %v461
    %v464 = vadd.f32 %v459, %v462
    %v465 = vstv %s174
    %v466 = vmul.f32 %v358, %v465
    %v467 = vmul.f32 %v359, %v465
    %v468 = vadd.f32 %v463, %v466
    %v469 = vadd.f32 %v464, %v467
    %v470 = vstv %s176
    %v471 = vmul.f32 %v381, %v470
    %v472 = vmul.f32 %v382, %v470
    %v473 = vadd.f32 %v468, %v471
    %v474 = vadd.f32 %v469, %v472
    %v475 = vstv %s178
    %v476 = vmul.f32 %v404, %v475
    %v477 = vmul.f32 %v405, %v475
    %v478 = vadd.f32 %v473, %v476
    %v479 = vadd.f32 %v474, %v477
    %v480 = vstv %s180
    %v481 = vmul.f32 %v427, %v480
    %v482 = vmul.f32 %v428, %v480
    %v483 = vadd.f32 %v478, %v481
    %v484 = vadd.f32 %v479, %v482
    %v485 = vstv %s182
    %v486 = vmul.f32 %v450, %v485
    %v487 = vmul.f32 %v451, %v485
    %v488 = vadd.f32 %v483, %v486
    %v489 = vadd.f32 %v484, %v487
    %v490 = vstv %s184
    %v491 = vadd.f32 %v488, %v490
    %v492 = vadd.f32 %v489, %v490
    %v493 = vstv %s169
    %v494 = vmul.f32 %v289, %v493
    %v495 = vmul.f32 %v290, %v493
    %v496 = vstv %s171
    %v497 = vmul.f32 %v312, %v496
    %v498 = vmul.f32 %v313, %v496
    %v499 = vadd.f32 %v494, %v497
    %v500 = vadd.f32 %v495, %v498
    %v501 = vstv %s173
    %v502 = vmul.f32 %v335, %v501
    %v503 = vmul.f32 %v336, %v501
    %v504 = vadd.f32 %v499, %v502
    %v505 = vadd.f32 %v500, %v503
    %v506 = vstv %s175
    %v507 = vmul.f32 %v358, %v506
    %v508 = vmul.f32 %v359, %v506
    %v509 = vadd.f32 %v504, %v507
    %v510 = vadd.f32 %v505, %v508
    %v511 = vstv %s177
    %v512 = vmul.f32 %v381, %v511
    %v513 = vmul.f32 %v382, %v511
    %v514 = vadd.f32 %v509, %v512
    %v515 = vadd.f32 %v510, %v513
    %v516 = vstv %s179
    %v517 = vmul.f32 %v404, %v516
    %v518 = vmul.f32 %v405, %v516
    %v519 = vadd.f32 %v514, %v517
    %v520 = vadd.f32 %v515, %v518
    %v521 = vstv %s181
    %v522 = vmul.f32 %v427, %v521
    %v523 = vmul.f32 %v428, %v521
    %v524 = vadd.f32 %v519, %v522
    %v525 = vadd.f32 %v520, %v523
    %v526 = vstv %s183
    %v527 = vmul.f32 %v450, %v526
    %v528 = vmul.f32 %v451, %v526
    %v529 = vadd.f32 %v524, %v527
    %v530 = vadd.f32 %v525, %v528
    %v531 = vstv %s185
    %v532 = vadd.f32 %v529, %v531
    %v533 = vadd.f32 %v530, %v531
    %v534 = vsub.f32 %v491, %v532
    %v535 = vsub.f32 %v492, %v533
    %v536 = vmul.f32 %v534, 1.442695
    %v537 = vpow.pop %v536
    %v538 = vmul.f32 %v535, 1.442695
    %v539 = vpow.pop %v538
    %v540 = vadd.f32 %v537, 1.0
    %v541 = vadd.f32 %v539, 1.0
    %v542 = vrcp.pop %v540
    %v543 = vrcp.pop %v541
    %v544 = vsub.f32 1.0, %v542
    %v545 = vsub.f32 1.0, %v543
    %546 = vst [vmem:[#allocation15] sm:$0xff] %v544
    %547 = vst [vmem:[#allocation15 + $0x8] sm:$0xff] %v545
    %s548 = scalar_lea.vmem [#allocation15], %s188
    %549 = vst [vmem:[%s548] sm:$0xff] %v542
    %550 = vst [vmem:[%s548 + $0x8] sm:$0xff] %v543
    // Predicated region
    $region58: #{tpu_custom_call.1} parent=1 // pred_check
      _
    $region59: #{tpu_custom_call.1} parent=1 // pred_check_branch
      %552 = sbr.rel (0) target = $region61
    $region60: #{tpu_custom_call.1} parent=1 // pred_region
      %s554 = ssub.s32 512, 512
      %555 = vsyncadd [#allocation4], %s554
      %s556 = sshll.u32 [#allocation15], 4
      %s557 = int_to_ptr.vmem [resolvable:$true] %s556
      %562 = dma.vmem_to_hbm [thread:$0]  %s557, 512, %s7, [#allocation4], 128, 128, 8
    $region61: #{tpu_custom_call.1} parent=1 // pred_fallthru
      _
    // Predicated region
    $region62: #{tpu_custom_call.1} parent=1 // pred_check
      _
    $region63: #{tpu_custom_call.1} parent=1 // pred_check_branch
      %564 = sbr.rel (0) target = $region65
    $region64: #{tpu_custom_call.1} parent=1 // pred_region
      %565 = dma.done [#allocation4], 512
    $region65: #{tpu_custom_call.1} parent=1 // pred_fallthru
      _
    %566 = vsyncpa [#allocation3], 1
    %567 = vsyncpa [#allocation4], 1
    %568 = vsyncpa [#allocation5], 1
    %569 = vsyncpa [#allocation8], 1
    %570 = vsyncpa [#allocation11], 1
    %571 = vsyncpa [#allocation14], 1

</llo_original>
